<compile_context>
chip_gen: v7x
topology: tpu7x:2x2x1
jax: 0.10.0
libtpu: 0.0.40
codegen_flags: <defaults>
</compile_context>

<pallas_src>
import functools
import math

import jax
import jax.numpy as jnp
from jax.experimental import pallas as pl
from jax.experimental.pallas import tpu as pltpu

_LANE = 128


def _layernorm_kernel(x_ref, gamma_ref, beta_ref, o_ref, *, eps, hidden, needs_mask):
    # x_ref: (tile_rows, hidden_padded); gamma/beta: (1, hidden_padded)
    x = x_ref[...].astype(jnp.float32)
    inv_h = jnp.float32(1.0 / hidden)

    # mean over the real hidden elements (padded lanes are zero -> sum is exact)
    mean = jnp.sum(x, axis=-1, keepdims=True) * inv_h

    # center once, reuse for variance and normalization
    xc = x - mean
    if needs_mask:
        lane = jax.lax.broadcasted_iota(jnp.int32, x.shape, dimension=1)
        xc = jnp.where(lane < hidden, xc, 0.0)

    var = jnp.sum(xc * xc, axis=-1, keepdims=True) * inv_h  # biased, like torch .mean
    inv_std = jax.lax.rsqrt(var + eps)                      # EUP slot (free-ish)
    y = xc * inv_std

    gamma = gamma_ref[...].astype(jnp.float32)
    beta = beta_ref[...].astype(jnp.float32)
    o_ref[...] = (gamma * y + beta).astype(o_ref.dtype)


def _pick_tile_rows(rows, hidden_padded, itemsize, sublane):
    # Target ~4 MiB per x tile (memory-bound kernel: amortize the ~0.35 us
    # per-grid-step overhead), rounded to sublane multiples.
    target_bytes = 4 * 1024 * 1024
    tr = max(sublane, target_bytes // max(1, hidden_padded * itemsize))
    rows_min = ((rows + sublane - 1) // sublane) * sublane
    tr = min(tr, rows_min)
    tr = max(sublane, (tr // sublane) * sublane)
    return int(tr)


def layer_normalization(x, gamma, beta, *, eps=1e-5, tile_rows=None):
    """LayerNorm over the trailing dims covered by gamma/beta (torch semantics)."""
    assert gamma.shape == beta.shape, "gamma/beta shape mismatch"
    p_ndim = gamma.ndim
    assert x.shape[x.ndim - p_ndim:] == gamma.shape, (
        "parameters_shape must match trailing dims of input")

    orig_shape = x.shape
    hidden = math.prod(gamma.shape)
    rows = x.size // hidden

    x2 = x.reshape(rows, hidden)
    g2 = gamma.reshape(1, hidden)
    b2 = beta.reshape(1, hidden)

    # --- pad hidden to a multiple of 128 lanes (lane-dense stores) -----------
    hidden_p = ((hidden + _LANE - 1) // _LANE) * _LANE
    needs_mask = hidden_p != hidden
    if needs_mask:
        pad_h = hidden_p - hidden
        x2 = jnp.pad(x2, ((0, 0), (0, pad_h)))
        g2 = jnp.pad(g2, ((0, 0), (0, pad_h)))
        b2 = jnp.pad(b2, ((0, 0), (0, pad_h)))

    # --- pick tile_rows and pad rows so the grid divides evenly --------------
    itemsize = jnp.dtype(x.dtype).itemsize
    sublane = 8 if itemsize >= 4 else (16 if itemsize == 2 else 32)
    if tile_rows is None:
        tile_rows = _pick_tile_rows(rows, hidden_p, itemsize, sublane)
    else:
        tile_rows = max(sublane, (int(tile_rows) // sublane) * sublane)

    rows_p = pl.cdiv(rows, tile_rows) * tile_rows
    if rows_p != rows:
        x2 = jnp.pad(x2, ((0, rows_p - rows), (0, 0)))

    grid = (rows_p // tile_rows,)

    # --- VMEM budget: double-buffered in/out tiles + f32 temporaries ---------
    block_in = tile_rows * hidden_p * itemsize
    block_out = tile_rows * hidden_p * itemsize
    f32_block = tile_rows * hidden_p * 4
    est = 2 * block_in + 2 * block_out + 3 * f32_block + 4 * hidden_p * 4
    vmem_limit = int(min(64 * 1024 * 1024, max(32 * 1024 * 1024, est * 3 // 2)))

    cost = pl.CostEstimate(
        flops=8 * rows * hidden,
        transcendentals=rows,
        bytes_accessed=(2 * rows * hidden + 2 * hidden) * itemsize,
    )

    out2 = pl.pallas_call(
        functools.partial(
            _layernorm_kernel, eps=eps, hidden=hidden, needs_mask=needs_mask),
        out_shape=jax.ShapeDtypeStruct((rows_p, hidden_p), x.dtype),
        grid_spec=pltpu.PrefetchScalarGridSpec(
            num_scalar_prefetch=0,
            grid=grid,
            in_specs=[
                pl.BlockSpec((tile_rows, hidden_p), lambda i: (i, 0)),
                pl.BlockSpec((1, hidden_p), lambda i: (0, 0)),
                pl.BlockSpec((1, hidden_p), lambda i: (0, 0)),
            ],
            out_specs=pl.BlockSpec((tile_rows, hidden_p), lambda i: (i, 0)),
        ),
        compiler_params=pltpu.CompilerParams(
            dimension_semantics=("parallel",),
            vmem_limit_bytes=vmem_limit,
        ),
        cost_estimate=cost,
    )(x2, g2, b2)

    out2 = out2[:rows, :hidden]
    return out2.reshape(orig_shape)


def _reference(x, gamma, beta, eps=1e-5):
    # Pure-JAX reference matching the PyTorch forward exactly.
    dims = tuple(range(x.ndim - gamma.ndim, x.ndim))
    mean = jnp.mean(x, axis=dims, keepdims=True)
    var = jnp.mean((x - mean) ** 2, axis=dims, keepdims=True)
    std = jnp.sqrt(var + eps)
    y = (x - mean) / std
    return gamma * y + beta


if __name__ == "__main__":
    # parameters_shape = (hidden,) with hidden=32; input (batch=2, seq=8, hidden=32)
    batch, seq, hidden = 2, 8, 32
    key = jax.random.PRNGKey(0)
    x = jax.random.normal(key, (batch, seq, hidden), dtype=jnp.float32)

    # Deterministic parameter init, matching nn.Parameter(torch.ones/zeros(...))
    gamma = jnp.ones((hidden,), dtype=jnp.float32)
    beta = jnp.zeros((hidden,), dtype=jnp.float32)

    out = layer_normalization(x, gamma, beta, eps=1e-5)
    out = jax.block_until_ready(out)

    ref = _reference(x, gamma, beta, eps=1e-5)
    assert out.shape == x.shape
    assert jnp.allclose(out, ref, atol=1e-5, rtol=1e-5), "mismatch vs reference"

    print("KERNEL_OK")
</pallas_src>

<mosaic_0001>
module attributes {stable_mosaic.version = 11 : i64} {
  func.func @_layernorm_kernel(%arg0: i32, %arg1: memref<16x128xf32, #tpu.memory_space<vmem>>, %arg2: memref<1x128xf32, #tpu.memory_space<vmem>>, %arg3: memref<1x128xf32, #tpu.memory_space<vmem>>, %arg4: memref<16x128xf32, #tpu.memory_space<vmem>>) attributes {dimension_semantics = [#tpu.dimension_semantics<parallel>], iteration_bounds = array<i64: 1>, scalar_prefetch = 0 : i64, scratch_operands = 0 : i64, tpu.core_type = #tpu.core_type<tc>, window_params = [{transform_indices = @transform_0, window_bounds = array<i64: 16, 128>}, {pipeline_mode = #tpu.pipeline_mode<synchronous>, transform_indices = @transform_1, window_bounds = array<i64: 1, 128>}, {pipeline_mode = #tpu.pipeline_mode<synchronous>, transform_indices = @transform_2, window_bounds = array<i64: 1, 128>}, {transform_indices = @transform_3, window_bounds = array<i64: 16, 128>}]} {
    %c0 = arith.constant 0 : index
    %c0_0 = arith.constant 0 : index
    %0 = vector.load %arg1[%c0, %c0_0] : memref<16x128xf32, #tpu.memory_space<vmem>>, vector<16x128xf32>
    %cst = arith.constant dense<0.000000e+00> : vector<16xf32>
    %1 = vector.multi_reduction <add>, %0, %cst [1] : vector<16x128xf32> to vector<16xf32>
    %2 = vector.shape_cast %1 : vector<16xf32> to vector<16x1xf32>
    %cst_1 = arith.constant 3.125000e-02 : f32
    %3 = vector.broadcast %cst_1 : f32 to vector<16x1xf32>
    %4 = arith.mulf %2, %3 : vector<16x1xf32>
    %5 = vector.broadcast %4 : vector<16x1xf32> to vector<16x128xf32>
    %6 = arith.subf %0, %5 : vector<16x128xf32>
    %7 = tpu.iota {dimensions = array<i32: 1>} : vector<16x128xi32>
    %c32_i32 = arith.constant 32 : i32
    %8 = vector.broadcast %c32_i32 : i32 to vector<16x128xi32>
    %9 = arith.cmpi slt, %7, %8 : vector<16x128xi32>
    %cst_2 = arith.constant 0.000000e+00 : f32
    %10 = vector.broadcast %cst_2 : f32 to vector<16x128xf32>
    %11 = arith.select %9, %6, %10 : vector<16x128xi1>, vector<16x128xf32>
    %12 = arith.mulf %11, %11 : vector<16x128xf32>
    %cst_3 = arith.constant dense<0.000000e+00> : vector<16xf32>
    %13 = vector.multi_reduction <add>, %12, %cst_3 [1] : vector<16x128xf32> to vector<16xf32>
    %14 = vector.shape_cast %13 : vector<16xf32> to vector<16x1xf32>
    %cst_4 = arith.constant 3.125000e-02 : f32
    %15 = vector.broadcast %cst_4 : f32 to vector<16x1xf32>
    %16 = arith.mulf %14, %15 : vector<16x1xf32>
    %cst_5 = arith.constant 9.99999974E-6 : f32
    %17 = vector.broadcast %cst_5 : f32 to vector<16x1xf32>
    %18 = arith.addf %16, %17 : vector<16x1xf32>
    %19 = math.rsqrt %18 : vector<16x1xf32>
    %20 = vector.broadcast %19 : vector<16x1xf32> to vector<16x128xf32>
    %21 = arith.mulf %11, %20 : vector<16x128xf32>
    %c0_6 = arith.constant 0 : index
    %c0_7 = arith.constant 0 : index
    %22 = vector.load %arg2[%c0_6, %c0_7] : memref<1x128xf32, #tpu.memory_space<vmem>>, vector<1x128xf32>
    %c0_8 = arith.constant 0 : index
    %c0_9 = arith.constant 0 : index
    %23 = vector.load %arg3[%c0_8, %c0_9] : memref<1x128xf32, #tpu.memory_space<vmem>>, vector<1x128xf32>
    %24 = vector.broadcast %22 : vector<1x128xf32> to vector<16x128xf32>
    %25 = arith.mulf %24, %21 : vector<16x128xf32>
    %26 = vector.broadcast %23 : vector<1x128xf32> to vector<16x128xf32>
    %27 = arith.addf %25, %26 : vector<16x128xf32>
    %c0_10 = arith.constant 0 : index
    %c0_11 = arith.constant 0 : index
    %28 = vector.load %arg4[%c0_10, %c0_11] : memref<16x128xf32, #tpu.memory_space<vmem>>, vector<16x128xf32>
    tpu.vector_store %arg4[%c0_10, %c0_11], %27 {strides = array<i32>} : memref<16x128xf32, #tpu.memory_space<vmem>>, vector<16x128xf32>,
    return
  }
  func.func @transform_0(%arg0: i32) -> (i32, i32) {
    %c0_i32 = arith.constant 0 : i32
    %c0_i32_0 = arith.constant 0 : i32
    return %arg0, %c0_i32 : i32, i32
  }
  func.func @transform_1(%arg0: i32) -> (i32, i32) {
    %c0_i32 = arith.constant 0 : i32
    %c0_i32_0 = arith.constant 0 : i32
    %c0_i32_1 = arith.constant 0 : i32
    return %c0_i32, %c0_i32_0 : i32, i32
  }
  func.func @transform_2(%arg0: i32) -> (i32, i32) {
    %c0_i32 = arith.constant 0 : i32
    %c0_i32_0 = arith.constant 0 : i32
    %c0_i32_1 = arith.constant 0 : i32
    return %c0_i32, %c0_i32_0 : i32, i32
  }
  func.func @transform_3(%arg0: i32) -> (i32, i32) {
    %c0_i32 = arith.constant 0 : i32
    %c0_i32_0 = arith.constant 0 : i32
    return %arg0, %c0_i32 : i32, i32
  }
}

</mosaic_0001>

<llo_original>
// kernel: tpu_custom_call.1
$region0: #{tpu_custom_call.1}
  #allocation0 [shape = 'u32[]', space=smem, size = 0x4, offset = 0x4, fixed_abs, tag = 'smem constant byte address 0x4 - core index']
  #allocation1 [shape = 'u32[144,128]{1,0:T(1,128)}', space=vmem, size = 0x12000, scoped, tag = 'internal scratch']
  %s0 = inlined_call_operand.hbm [shape: f32[16,128], index: 0, kind: input, shape index: {}]
  %s1 = inlined_call_operand.vmem [shape: f32[1,128], index: 1, kind: input, shape index: {}]
  %s2 = inlined_call_operand.vmem [shape: f32[1,128], index: 2, kind: input, shape index: {}]
  %s3 = inlined_call_operand.hbm [shape: f32[16,128], index: 3, kind: output, shape index: {}]
  %s4 = sld [smem:[#allocation0]]
  $region26: #{tpu_custom_call.1} parent=0
    _
  %s6 = ssub.s32 1, %s4
  %s7 = scalar_select 0, %s6, %s4
  $region1: #{tpu_custom_call.1} parent=0
    #allocation2 [shape = 'u8[8192]{0}', space=vmem, size = 0x2000, scoped, tag = 'input window, operand 0, single buffered']
    #allocation3 [shape = 's32[1]{0}', space=sflag, size = 0x4, scoped, tag = 'scoped memory for tpu_custom_call.1']
    #allocation4 [shape = 's32[1]{0}', space=sflag, size = 0x4, scoped, tag = 'scoped memory for tpu_custom_call.1']
    #allocation5 [shape = 'u8[8192]{0}', space=vmem, size = 0x2000, scoped, tag = 'output window, operand 0, single buffered']
    %8 = vsyncpa [#allocation3], 0
    %9 = vsyncpa [#allocation4], 0
    // Predicated region
    $region2: #{tpu_custom_call.1} parent=1 // pred_check
      _
    $region3: #{tpu_custom_call.1} parent=1 // pred_check_branch
      %11 = sbr.rel (0) target = $region5
    $region4: #{tpu_custom_call.1} parent=1 // pred_region
      %s13 = ssub.s32 256, 256
      %14 = vsyncadd [#allocation3], %s13
      %s15 = sshll.u32 [#allocation2], 4
      %s16 = int_to_ptr.vmem [resolvable:$true] %s15
      %21 = dma.hbm_to_vmem [thread:$0]  %s0, 256, %s16, [#allocation3], 128, 128, 8
    $region5: #{tpu_custom_call.1} parent=1 // pred_fallthru
      _
    // Predicated region
    $region6: #{tpu_custom_call.1} parent=1 // pred_check
      _
    $region7: #{tpu_custom_call.1} parent=1 // pred_check_branch
      %23 = sbr.rel (0) target = $region9
    $region8: #{tpu_custom_call.1} parent=1 // pred_region
      _
    $region9: #{tpu_custom_call.1} parent=1 // pred_fallthru
      _
    // Predicated region
    $region10: #{tpu_custom_call.1} parent=1 // pred_check
      _
    $region11: #{tpu_custom_call.1} parent=1 // pred_check_branch
      %25 = sbr.rel (0) target = $region13
    $region12: #{tpu_custom_call.1} parent=1 // pred_region
      _
    $region13: #{tpu_custom_call.1} parent=1 // pred_fallthru
      _
    // Predicated region
    $region14: #{tpu_custom_call.1} parent=1 // pred_check
      _
    $region15: #{tpu_custom_call.1} parent=1 // pred_check_branch
      %27 = sbr.rel (0) target = $region17
    $region16: #{tpu_custom_call.1} parent=1 // pred_region
      %28 = dma.done [#allocation3], 256
    $region17: #{tpu_custom_call.1} parent=1 // pred_fallthru
      _
    %v29 = vld [vmem:[#allocation2] sm:$0xff]
    %v30 = vld [vmem:[#allocation2 + $0x8] sm:$0xff]
    %31 = vadd.xlane.f32.xlu0 %v29
    %v32 = vpop.xlane.xlu0 %31
    %33 = vadd.xlane.f32.xlu0 %v30
    %v34 = vpop.xlane.xlu0 %33
    %v35 = vmul.f32 %v32, 0.03125
    %v36 = vmul.f32 %v34, 0.03125
    %v37 = vsub.f32 %v29, %v35
    %v38 = vsub.f32 %v30, %v36
    %v39 = vlaneseq
    %v40 = vand.u32 %v39, 127
    %vm41 = vcmp.lt.s32.totalorder %v40, 32
    %v42 = vsel %vm41, %v37, 0.0
    %v43 = vsel %vm41, %v38, 0.0
    %v44 = vmul.f32 %v42, %v42
    %v45 = vmul.f32 %v43, %v43
    %46 = vadd.xlane.f32.xlu0 %v44
    %v47 = vpop.xlane.xlu0 %46
    %48 = vadd.xlane.f32.xlu0 %v45
    %v49 = vpop.xlane.xlu0 %48
    %v50 = vmul.f32 %v47, 0.03125
    %v51 = vmul.f32 %v49, 0.03125
    %v52 = vadd.f32 %v50, 1e-05
    %v53 = vadd.f32 %v51, 1e-05
    %v54 = vrsqrt.pop %v52
    %v55 = vrsqrt.pop %v53
    %v56 = vmul.f32 %v42, %v54
    %v57 = vmul.f32 %v43, %v55
    %v58 = vld [vmem:[%s1] sm:$0x1]
    %v59 = vld [vmem:[%s2] sm:$0x1]
    %v61 = vlaneseq
    %v62 = vshrl.u32 %v61, 7
    %v63 = vsub.s32 0, %v62
    %v64 = vrot.slane %v58, %v63
    %v66 = vmul.f32 %v64, %v56
    %v67 = vmul.f32 %v64, %v57
    %v69 = vlaneseq
    %v70 = vshrl.u32 %v69, 7
    %v71 = vsub.s32 0, %v70
    %v72 = vrot.slane %v59, %v71
    %v74 = vadd.f32 %v66, %v72
    %v75 = vadd.f32 %v67, %v72
    %76 = vst [vmem:[#allocation5] sm:$0xff] %v74
    %77 = vst [vmem:[#allocation5 + $0x8] sm:$0xff] %v75
    // Predicated region
    $region18: #{tpu_custom_call.1} parent=1 // pred_check
      _
    $region19: #{tpu_custom_call.1} parent=1 // pred_check_branch
      %79 = sbr.rel (0) target = $region21
    $region20: #{tpu_custom_call.1} parent=1 // pred_region
      %s81 = ssub.s32 256, 256
      %82 = vsyncadd [#allocation4], %s81
      %s83 = sshll.u32 [#allocation5], 4
      %s84 = int_to_ptr.vmem [resolvable:$true] %s83
      %89 = dma.vmem_to_hbm [thread:$0]  %s84, 256, %s3, [#allocation4], 128, 128, 8
    $region21: #{tpu_custom_call.1} parent=1 // pred_fallthru
      _
    // Predicated region
    $region22: #{tpu_custom_call.1} parent=1 // pred_check
      _
    $region23: #{tpu_custom_call.1} parent=1 // pred_check_branch
      %91 = sbr.rel (0) target = $region25
    $region24: #{tpu_custom_call.1} parent=1 // pred_region
      %92 = dma.done [#allocation4], 256
    $region25: #{tpu_custom_call.1} parent=1 // pred_fallthru
      _
    %93 = vsyncpa [#allocation3], 1
    %94 = vsyncpa [#allocation4], 1

</llo_original>
